<compile_context>
chip_gen: v7x
topology: tpu7x:2x2x1
jax: 0.10.0
libtpu: 0.0.40
codegen_flags: <defaults>
</compile_context>

<pallas_src>
import jax
import jax.numpy as jnp
from jax.experimental import pallas as pl
from jax.experimental.pallas import tpu as pltpu

_HALO = 8                    # halo block height (one sublane granule)
_DEFAULT_TH_CAP = 256        # max rows per H-tile (before VMEM budget clamp)
_VMEM_BUDGET = 20 << 20      # target double-buffered working set (bytes)
_VMEM_LIMIT = 48 << 20       # scoped VMEM limit (safe on v5e/v6e/v7x)


def _pick_tile_h(H, W, in_itemsize, cap):
    """Largest TH that divides H, is a multiple of 8, and fits the VMEM budget.

    Falls back to the whole image if no divisor works (BlockSpec then uses the
    full array extent, which is always legal).
    """
    # Double-buffered bytes per tile row: 3 inputs + 1 f32 output.
    row_bytes = 2 * W * (3 * in_itemsize + 4)
    vmem_rows = max(_HALO, (_VMEM_BUDGET // max(row_bytes, 1)) // _HALO * _HALO)
    cap = min(cap, vmem_rows)
    if H <= cap:
        return H
    for th in range(min(cap, H), _HALO - 1, -1):
        if th % _HALO == 0 and H % th == 0:
            return th
    return H


def _make_gradloss_kernel(TH, W, use_halo):
    def kernel(*refs):
        if use_halo:
            (vis_ref, ir_ref, gen_ref,
             vis_p, ir_p, gen_p,
             vis_n, ir_n, gen_n, out_ref) = refs
        else:
            vis_ref, ir_ref, gen_ref, out_ref = refs
            vis_p = ir_p = gen_p = vis_n = ir_n = gen_n = None

        t = pl.program_id(1)
        n_t = pl.num_programs(1)
        row = jax.lax.broadcasted_iota(jnp.int32, (TH, W), 0)
        col = jax.lax.broadcasted_iota(jnp.int32, (TH, W), 1)

        def sobel(x_ref, p_ref, n_ref):
            x = x_ref[...].astype(jnp.float32)
            if p_ref is not None:
                # Last row of the previous tile / first row of the next tile,
                # zeroed at the image top/bottom (conv pad=1 zero boundary).
                prev_row = jnp.where(
                    t > 0, p_ref[_HALO - 1:_HALO, :].astype(jnp.float32), 0.0)
                next_row = jnp.where(
                    t < n_t - 1, n_ref[0:1, :].astype(jnp.float32), 0.0)
            else:
                prev_row = jnp.zeros((1, W), jnp.float32)
                next_row = jnp.zeros((1, W), jnp.float32)

            # Row shifts (sublane rolls): up[i] = x[i-1], down[i] = x[i+1].
            up = jnp.where(row == 0, prev_row,
                           pltpu.roll(x, shift=1, axis=0))
            down = jnp.where(row == TH - 1, next_row,
                             pltpu.roll(x, shift=TH - 1, axis=0))

            # Separable Sobel intermediates.
            sv = up + 2.0 * x + down        # vertical smoothing (for gx)
            dv = up - down                  # vertical difference (for gy)

            # Column shifts (lane rolls) with zero boundary at j==0 / j==W-1.
            def at_jp1(a):                  # value at column j+1
                return jnp.where(col == W - 1, 0.0,
                                 pltpu.roll(a, shift=W - 1, axis=1))

            def at_jm1(a):                  # value at column j-1
                return jnp.where(col == 0, 0.0,
                                 pltpu.roll(a, shift=1, axis=1))

            gx = at_jp1(sv) - at_jm1(sv)
            gy = at_jm1(dv) + 2.0 * dv + at_jp1(dv)
            return jnp.abs(gx) + jnp.abs(gy)

        g_vis = sobel(vis_ref, vis_p, vis_n)
        g_ir = sobel(ir_ref, ir_p, ir_n)
        g_gen = sobel(gen_ref, gen_p, gen_n)

        # l1_loss(..., reduction='none') -> elementwise absolute difference.
        out_ref[...] = jnp.abs(jnp.maximum(g_vis, g_ir) - g_gen).astype(out_ref.dtype)

    return kernel


def gradloss(image_vis, image_ir, generate_img, *, th_cap=_DEFAULT_TH_CAP):
    """image_vis: (B, C, H, W); image_ir, generate_img: (B, 1, H, W).

    Returns loss_grad of shape (B, 1, H, W), float32.
    """
    B, _, H, W = image_vis.shape
    in_itemsize = max(jnp.dtype(a.dtype).itemsize
                      for a in (image_vis, image_ir, generate_img))
    TH = _pick_tile_h(H, W, in_itemsize, th_cap)
    n_t = H // TH
    use_halo = n_t > 1

    # One (TH, W) tile of channel 0 per grid step; leading dims squeezed away.
    mid_spec = pl.BlockSpec((None, None, TH, W), lambda b, t: (b, 0, t, 0))
    in_specs = [mid_spec, mid_spec, mid_spec]
    args = [image_vis, image_ir, generate_img]

    if use_halo:
        nblk = TH // _HALO               # 8-row halo blocks per H-tile
        last_blk = H // _HALO - 1
        prev_spec = pl.BlockSpec(
            (None, None, _HALO, W),
            lambda b, t: (b, 0, jnp.maximum(t * nblk - 1, 0), 0))
        next_spec = pl.BlockSpec(
            (None, None, _HALO, W),
            lambda b, t: (b, 0, jnp.minimum((t + 1) * nblk, last_blk), 0))
        in_specs += [prev_spec] * 3 + [next_spec] * 3
        args += [image_vis, image_ir, generate_img] * 2

    out_spec = pl.BlockSpec((None, None, TH, W), lambda b, t: (b, 0, t, 0))

    return pl.pallas_call(
        _make_gradloss_kernel(TH, W, use_halo),
        out_shape=jax.ShapeDtypeStruct((B, 1, H, W), jnp.float32),
        grid=(B, n_t),
        in_specs=in_specs,
        out_specs=out_spec,
        compiler_params=pltpu.CompilerParams(
            dimension_semantics=("parallel", "parallel"),
            vmem_limit_bytes=_VMEM_LIMIT),
    )(*args)


def _reference(image_vis, image_ir, generate_img):
    """Pure-JAX reference using lax.conv for a correctness sanity check."""
    kx = jnp.array([[-1., 0., 1.], [-2., 0., 2.], [-1., 0., 1.]], jnp.float32)
    ky = jnp.array([[1., 2., 1.], [0., 0., 0.], [-1., -2., -1.]], jnp.float32)

    def conv(x, w):  # x: (B,1,H,W), w: (3,3)
        return jax.lax.conv_general_dilated(
            x.astype(jnp.float32), w[None, None, :, :],
            window_strides=(1, 1), padding=((1, 1), (1, 1)),
            dimension_numbers=("NCHW", "OIHW", "NCHW"))

    def sobel(x):
        return jnp.abs(conv(x, kx)) + jnp.abs(conv(x, ky))

    y_grad = sobel(image_vis[:, :1])
    ir_grad = sobel(image_ir)
    gen_grad = sobel(generate_img)
    return jnp.abs(jnp.maximum(y_grad, ir_grad) - gen_grad)


if __name__ == "__main__":
    key = jax.random.PRNGKey(0)
    k1, k2, k3 = jax.random.split(key, 3)

    # Small shapes consistent with the module's forward (NCHW, single-channel IR/gen).
    B, C, H, W = 2, 4, 16, 16
    image_vis = jax.random.uniform(k1, (B, C, H, W), jnp.float32)
    image_ir = jax.random.uniform(k2, (B, 1, H, W), jnp.float32)
    generate_img = jax.random.uniform(k3, (B, 1, H, W), jnp.float32)

    out = jax.block_until_ready(gradloss(image_vis, image_ir, generate_img))
    ref = jax.block_until_ready(_reference(image_vis, image_ir, generate_img))
    assert out.shape == (B, 1, H, W), out.shape
    assert jnp.max(jnp.abs(out - ref)) < 1e-5

    # Second check: exercise the H-tiled (halo) path with a lane-dense width.
    kk = jax.random.split(jax.random.PRNGKey(1), 3)
    B2, C2, H2, W2 = 1, 2, 32, 128
    v2 = jax.random.uniform(kk[0], (B2, C2, H2, W2), jnp.float32)
    i2 = jax.random.uniform(kk[1], (B2, 1, H2, W2), jnp.float32)
    g2 = jax.random.uniform(kk[2], (B2, 1, H2, W2), jnp.float32)
    out2 = jax.block_until_ready(gradloss(v2, i2, g2, th_cap=16))
    ref2 = jax.block_until_ready(_reference(v2, i2, g2))
    assert out2.shape == (B2, 1, H2, W2), out2.shape
    assert jnp.max(jnp.abs(out2 - ref2)) < 1e-5

    print("KERNEL_OK")
</pallas_src>

<mosaic_0001>
module attributes {stable_mosaic.version = 11 : i64} {
  func.func @kernel(%arg0: i32, %arg1: i32, %arg2: memref<1x1x16x16xf32, #tpu.memory_space<vmem>>, %arg3: memref<1x1x16x16xf32, #tpu.memory_space<vmem>>, %arg4: memref<1x1x16x16xf32, #tpu.memory_space<vmem>>, %arg5: memref<1x1x16x16xf32, #tpu.memory_space<vmem>>) attributes {dimension_semantics = [#tpu.dimension_semantics<parallel>, #tpu.dimension_semantics<parallel>], iteration_bounds = array<i64: 2, 1>, scalar_prefetch = 0 : i64, scratch_operands = 0 : i64, tpu.core_type = #tpu.core_type<tc>, window_params = [{transform_indices = @transform_0, window_bounds = array<i64: 1, 1, 16, 16>}, {transform_indices = @transform_1, window_bounds = array<i64: 1, 1, 16, 16>}, {transform_indices = @transform_2, window_bounds = array<i64: 1, 1, 16, 16>}, {transform_indices = @transform_3, window_bounds = array<i64: 1, 1, 16, 16>}]} {
    %0 = tpu.iota {dimensions = array<i32: 0>} : vector<16x16xi32>
    %1 = tpu.iota {dimensions = array<i32: 1>} : vector<16x16xi32>
    %c0 = arith.constant 0 : index
    %c0_0 = arith.constant 0 : index
    %c0_1 = arith.constant 0 : index
    %c0_2 = arith.constant 0 : index
    %2 = vector.load %arg2[%c0, %c0_0, %c0_1, %c0_2] : memref<1x1x16x16xf32, #tpu.memory_space<vmem>>, vector<1x1x16x16xf32>
    %3 = vector.shape_cast %2 : vector<1x1x16x16xf32> to vector<16x16xf32>
    %cst = arith.constant 0.000000e+00 : f32
    %4 = vector.broadcast %cst : f32 to vector<1x16xf32>
    %cst_3 = arith.constant 0.000000e+00 : f32
    %5 = vector.broadcast %cst_3 : f32 to vector<1x16xf32>
    %c0_i32 = arith.constant 0 : i32
    %6 = vector.broadcast %c0_i32 : i32 to vector<16x16xi32>
    %7 = arith.cmpi eq, %0, %6 : vector<16x16xi32>
    %c1_i32 = arith.constant 1 : i32
    %8 = tpu.dynamic_rotate %3 by %c1_i32 dim 0 : vector<16x16xf32>, i32 -> vector<16x16xf32>
    %9 = vector.shape_cast %4 : vector<1x16xf32> to vector<1x16xf32>
    %10 = vector.broadcast %9 : vector<1x16xf32> to vector<16x16xf32>
    %11 = arith.select %7, %10, %8 : vector<16x16xi1>, vector<16x16xf32>
    %c15_i32 = arith.constant 15 : i32
    %12 = vector.broadcast %c15_i32 : i32 to vector<16x16xi32>
    %13 = arith.cmpi eq, %0, %12 : vector<16x16xi32>
    %c15_i32_4 = arith.constant 15 : i32
    %14 = tpu.dynamic_rotate %3 by %c15_i32_4 dim 0 : vector<16x16xf32>, i32 -> vector<16x16xf32>
    %15 = vector.shape_cast %5 : vector<1x16xf32> to vector<1x16xf32>
    %16 = vector.broadcast %15 : vector<1x16xf32> to vector<16x16xf32>
    %17 = arith.select %13, %16, %14 : vector<16x16xi1>, vector<16x16xf32>
    %cst_5 = arith.constant 2.000000e+00 : f32
    %18 = vector.broadcast %cst_5 : f32 to vector<16x16xf32>
    %19 = arith.mulf %18, %3 : vector<16x16xf32>
    %20 = arith.addf %11, %19 : vector<16x16xf32>
    %21 = arith.addf %20, %17 : vector<16x16xf32>
    %22 = arith.subf %11, %17 : vector<16x16xf32>
    %c15_i32_6 = arith.constant 15 : i32
    %23 = vector.broadcast %c15_i32_6 : i32 to vector<16x16xi32>
    %24 = arith.cmpi eq, %1, %23 : vector<16x16xi32>
    %c15_i32_7 = arith.constant 15 : i32
    %25 = tpu.dynamic_rotate %21 by %c15_i32_7 dim 1 : vector<16x16xf32>, i32 -> vector<16x16xf32>
    %cst_8 = arith.constant 0.000000e+00 : f32
    %26 = vector.broadcast %cst_8 : f32 to vector<16x16xf32>
    %27 = arith.select %24, %26, %25 : vector<16x16xi1>, vector<16x16xf32>
    %c0_i32_9 = arith.constant 0 : i32
    %28 = vector.broadcast %c0_i32_9 : i32 to vector<16x16xi32>
    %29 = arith.cmpi eq, %1, %28 : vector<16x16xi32>
    %c1_i32_10 = arith.constant 1 : i32
    %30 = tpu.dynamic_rotate %21 by %c1_i32_10 dim 1 : vector<16x16xf32>, i32 -> vector<16x16xf32>
    %cst_11 = arith.constant 0.000000e+00 : f32
    %31 = vector.broadcast %cst_11 : f32 to vector<16x16xf32>
    %32 = arith.select %29, %31, %30 : vector<16x16xi1>, vector<16x16xf32>
    %33 = arith.subf %27, %32 : vector<16x16xf32>
    %c0_i32_12 = arith.constant 0 : i32
    %34 = vector.broadcast %c0_i32_12 : i32 to vector<16x16xi32>
    %35 = arith.cmpi eq, %1, %34 : vector<16x16xi32>
    %c1_i32_13 = arith.constant 1 : i32
    %36 = tpu.dynamic_rotate %22 by %c1_i32_13 dim 1 : vector<16x16xf32>, i32 -> vector<16x16xf32>
    %cst_14 = arith.constant 0.000000e+00 : f32
    %37 = vector.broadcast %cst_14 : f32 to vector<16x16xf32>
    %38 = arith.select %35, %37, %36 : vector<16x16xi1>, vector<16x16xf32>
    %cst_15 = arith.constant 2.000000e+00 : f32
    %39 = vector.broadcast %cst_15 : f32 to vector<16x16xf32>
    %40 = arith.mulf %39, %22 : vector<16x16xf32>
    %41 = arith.addf %38, %40 : vector<16x16xf32>
    %c15_i32_16 = arith.constant 15 : i32
    %42 = vector.broadcast %c15_i32_16 : i32 to vector<16x16xi32>
    %43 = arith.cmpi eq, %1, %42 : vector<16x16xi32>
    %c15_i32_17 = arith.constant 15 : i32
    %44 = tpu.dynamic_rotate %22 by %c15_i32_17 dim 1 : vector<16x16xf32>, i32 -> vector<16x16xf32>
    %cst_18 = arith.constant 0.000000e+00 : f32
    %45 = vector.broadcast %cst_18 : f32 to vector<16x16xf32>
    %46 = arith.select %43, %45, %44 : vector<16x16xi1>, vector<16x16xf32>
    %47 = arith.addf %41, %46 : vector<16x16xf32>
    %48 = math.absf %33 : vector<16x16xf32>
    %49 = math.absf %47 : vector<16x16xf32>
    %50 = arith.addf %48, %49 : vector<16x16xf32>
    %c0_19 = arith.constant 0 : index
    %c0_20 = arith.constant 0 : index
    %c0_21 = arith.constant 0 : index
    %c0_22 = arith.constant 0 : index
    %51 = vector.load %arg3[%c0_19, %c0_20, %c0_21, %c0_22] : memref<1x1x16x16xf32, #tpu.memory_space<vmem>>, vector<1x1x16x16xf32>
    %52 = vector.shape_cast %51 : vector<1x1x16x16xf32> to vector<16x16xf32>
    %cst_23 = arith.constant 0.000000e+00 : f32
    %53 = vector.broadcast %cst_23 : f32 to vector<1x16xf32>
    %cst_24 = arith.constant 0.000000e+00 : f32
    %54 = vector.broadcast %cst_24 : f32 to vector<1x16xf32>
    %c0_i32_25 = arith.constant 0 : i32
    %55 = vector.broadcast %c0_i32_25 : i32 to vector<16x16xi32>
    %56 = arith.cmpi eq, %0, %55 : vector<16x16xi32>
    %c1_i32_26 = arith.constant 1 : i32
    %57 = tpu.dynamic_rotate %52 by %c1_i32_26 dim 0 : vector<16x16xf32>, i32 -> vector<16x16xf32>
    %58 = vector.shape_cast %53 : vector<1x16xf32> to vector<1x16xf32>
    %59 = vector.broadcast %58 : vector<1x16xf32> to vector<16x16xf32>
    %60 = arith.select %56, %59, %57 : vector<16x16xi1>, vector<16x16xf32>
    %c15_i32_27 = arith.constant 15 : i32
    %61 = vector.broadcast %c15_i32_27 : i32 to vector<16x16xi32>
    %62 = arith.cmpi eq, %0, %61 : vector<16x16xi32>
    %c15_i32_28 = arith.constant 15 : i32
    %63 = tpu.dynamic_rotate %52 by %c15_i32_28 dim 0 : vector<16x16xf32>, i32 -> vector<16x16xf32>
    %64 = vector.shape_cast %54 : vector<1x16xf32> to vector<1x16xf32>
    %65 = vector.broadcast %64 : vector<1x16xf32> to vector<16x16xf32>
    %66 = arith.select %62, %65, %63 : vector<16x16xi1>, vector<16x16xf32>
    %cst_29 = arith.constant 2.000000e+00 : f32
    %67 = vector.broadcast %cst_29 : f32 to vector<16x16xf32>
    %68 = arith.mulf %67, %52 : vector<16x16xf32>
    %69 = arith.addf %60, %68 : vector<16x16xf32>
    %70 = arith.addf %69, %66 : vector<16x16xf32>
    %71 = arith.subf %60, %66 : vector<16x16xf32>
    %c15_i32_30 = arith.constant 15 : i32
    %72 = vector.broadcast %c15_i32_30 : i32 to vector<16x16xi32>
    %73 = arith.cmpi eq, %1, %72 : vector<16x16xi32>
    %c15_i32_31 = arith.constant 15 : i32
    %74 = tpu.dynamic_rotate %70 by %c15_i32_31 dim 1 : vector<16x16xf32>, i32 -> vector<16x16xf32>
    %cst_32 = arith.constant 0.000000e+00 : f32
    %75 = vector.broadcast %cst_32 : f32 to vector<16x16xf32>
    %76 = arith.select %73, %75, %74 : vector<16x16xi1>, vector<16x16xf32>
    %c0_i32_33 = arith.constant 0 : i32
    %77 = vector.broadcast %c0_i32_33 : i32 to vector<16x16xi32>
    %78 = arith.cmpi eq, %1, %77 : vector<16x16xi32>
    %c1_i32_34 = arith.constant 1 : i32
    %79 = tpu.dynamic_rotate %70 by %c1_i32_34 dim 1 : vector<16x16xf32>, i32 -> vector<16x16xf32>
    %cst_35 = arith.constant 0.000000e+00 : f32
    %80 = vector.broadcast %cst_35 : f32 to vector<16x16xf32>
    %81 = arith.select %78, %80, %79 : vector<16x16xi1>, vector<16x16xf32>
    %82 = arith.subf %76, %81 : vector<16x16xf32>
    %c0_i32_36 = arith.constant 0 : i32
    %83 = vector.broadcast %c0_i32_36 : i32 to vector<16x16xi32>
    %84 = arith.cmpi eq, %1, %83 : vector<16x16xi32>
    %c1_i32_37 = arith.constant 1 : i32
    %85 = tpu.dynamic_rotate %71 by %c1_i32_37 dim 1 : vector<16x16xf32>, i32 -> vector<16x16xf32>
    %cst_38 = arith.constant 0.000000e+00 : f32
    %86 = vector.broadcast %cst_38 : f32 to vector<16x16xf32>
    %87 = arith.select %84, %86, %85 : vector<16x16xi1>, vector<16x16xf32>
    %cst_39 = arith.constant 2.000000e+00 : f32
    %88 = vector.broadcast %cst_39 : f32 to vector<16x16xf32>
    %89 = arith.mulf %88, %71 : vector<16x16xf32>
    %90 = arith.addf %87, %89 : vector<16x16xf32>
    %c15_i32_40 = arith.constant 15 : i32
    %91 = vector.broadcast %c15_i32_40 : i32 to vector<16x16xi32>
    %92 = arith.cmpi eq, %1, %91 : vector<16x16xi32>
    %c15_i32_41 = arith.constant 15 : i32
    %93 = tpu.dynamic_rotate %71 by %c15_i32_41 dim 1 : vector<16x16xf32>, i32 -> vector<16x16xf32>
    %cst_42 = arith.constant 0.000000e+00 : f32
    %94 = vector.broadcast %cst_42 : f32 to vector<16x16xf32>
    %95 = arith.select %92, %94, %93 : vector<16x16xi1>, vector<16x16xf32>
    %96 = arith.addf %90, %95 : vector<16x16xf32>
    %97 = math.absf %82 : vector<16x16xf32>
    %98 = math.absf %96 : vector<16x16xf32>
    %99 = arith.addf %97, %98 : vector<16x16xf32>
    %c0_43 = arith.constant 0 : index
    %c0_44 = arith.constant 0 : index
    %c0_45 = arith.constant 0 : index
    %c0_46 = arith.constant 0 : index
    %100 = vector.load %arg4[%c0_43, %c0_44, %c0_45, %c0_46] : memref<1x1x16x16xf32, #tpu.memory_space<vmem>>, vector<1x1x16x16xf32>
    %101 = vector.shape_cast %100 : vector<1x1x16x16xf32> to vector<16x16xf32>
    %cst_47 = arith.constant 0.000000e+00 : f32
    %102 = vector.broadcast %cst_47 : f32 to vector<1x16xf32>
    %cst_48 = arith.constant 0.000000e+00 : f32
    %103 = vector.broadcast %cst_48 : f32 to vector<1x16xf32>
    %c0_i32_49 = arith.constant 0 : i32
    %104 = vector.broadcast %c0_i32_49 : i32 to vector<16x16xi32>
    %105 = arith.cmpi eq, %0, %104 : vector<16x16xi32>
    %c1_i32_50 = arith.constant 1 : i32
    %106 = tpu.dynamic_rotate %101 by %c1_i32_50 dim 0 : vector<16x16xf32>, i32 -> vector<16x16xf32>
    %107 = vector.shape_cast %102 : vector<1x16xf32> to vector<1x16xf32>
    %108 = vector.broadcast %107 : vector<1x16xf32> to vector<16x16xf32>
    %109 = arith.select %105, %108, %106 : vector<16x16xi1>, vector<16x16xf32>
    %c15_i32_51 = arith.constant 15 : i32
    %110 = vector.broadcast %c15_i32_51 : i32 to vector<16x16xi32>
    %111 = arith.cmpi eq, %0, %110 : vector<16x16xi32>
    %c15_i32_52 = arith.constant 15 : i32
    %112 = tpu.dynamic_rotate %101 by %c15_i32_52 dim 0 : vector<16x16xf32>, i32 -> vector<16x16xf32>
    %113 = vector.shape_cast %103 : vector<1x16xf32> to vector<1x16xf32>
    %114 = vector.broadcast %113 : vector<1x16xf32> to vector<16x16xf32>
    %115 = arith.select %111, %114, %112 : vector<16x16xi1>, vector<16x16xf32>
    %cst_53 = arith.constant 2.000000e+00 : f32
    %116 = vector.broadcast %cst_53 : f32 to vector<16x16xf32>
    %117 = arith.mulf %116, %101 : vector<16x16xf32>
    %118 = arith.addf %109, %117 : vector<16x16xf32>
    %119 = arith.addf %118, %115 : vector<16x16xf32>
    %120 = arith.subf %109, %115 : vector<16x16xf32>
    %c15_i32_54 = arith.constant 15 : i32
    %121 = vector.broadcast %c15_i32_54 : i32 to vector<16x16xi32>
    %122 = arith.cmpi eq, %1, %121 : vector<16x16xi32>
    %c15_i32_55 = arith.constant 15 : i32
    %123 = tpu.dynamic_rotate %119 by %c15_i32_55 dim 1 : vector<16x16xf32>, i32 -> vector<16x16xf32>
    %cst_56 = arith.constant 0.000000e+00 : f32
    %124 = vector.broadcast %cst_56 : f32 to vector<16x16xf32>
    %125 = arith.select %122, %124, %123 : vector<16x16xi1>, vector<16x16xf32>
    %c0_i32_57 = arith.constant 0 : i32
    %126 = vector.broadcast %c0_i32_57 : i32 to vector<16x16xi32>
    %127 = arith.cmpi eq, %1, %126 : vector<16x16xi32>
    %c1_i32_58 = arith.constant 1 : i32
    %128 = tpu.dynamic_rotate %119 by %c1_i32_58 dim 1 : vector<16x16xf32>, i32 -> vector<16x16xf32>
    %cst_59 = arith.constant 0.000000e+00 : f32
    %129 = vector.broadcast %cst_59 : f32 to vector<16x16xf32>
    %130 = arith.select %127, %129, %128 : vector<16x16xi1>, vector<16x16xf32>
    %131 = arith.subf %125, %130 : vector<16x16xf32>
    %c0_i32_60 = arith.constant 0 : i32
    %132 = vector.broadcast %c0_i32_60 : i32 to vector<16x16xi32>
    %133 = arith.cmpi eq, %1, %132 : vector<16x16xi32>
    %c1_i32_61 = arith.constant 1 : i32
    %134 = tpu.dynamic_rotate %120 by %c1_i32_61 dim 1 : vector<16x16xf32>, i32 -> vector<16x16xf32>
    %cst_62 = arith.constant 0.000000e+00 : f32
    %135 = vector.broadcast %cst_62 : f32 to vector<16x16xf32>
    %136 = arith.select %133, %135, %134 : vector<16x16xi1>, vector<16x16xf32>
    %cst_63 = arith.constant 2.000000e+00 : f32
    %137 = vector.broadcast %cst_63 : f32 to vector<16x16xf32>
    %138 = arith.mulf %137, %120 : vector<16x16xf32>
    %139 = arith.addf %136, %138 : vector<16x16xf32>
    %c15_i32_64 = arith.constant 15 : i32
    %140 = vector.broadcast %c15_i32_64 : i32 to vector<16x16xi32>
    %141 = arith.cmpi eq, %1, %140 : vector<16x16xi32>
    %c15_i32_65 = arith.constant 15 : i32
    %142 = tpu.dynamic_rotate %120 by %c15_i32_65 dim 1 : vector<16x16xf32>, i32 -> vector<16x16xf32>
    %cst_66 = arith.constant 0.000000e+00 : f32
    %143 = vector.broadcast %cst_66 : f32 to vector<16x16xf32>
    %144 = arith.select %141, %143, %142 : vector<16x16xi1>, vector<16x16xf32>
    %145 = arith.addf %139, %144 : vector<16x16xf32>
    %146 = math.absf %131 : vector<16x16xf32>
    %147 = math.absf %145 : vector<16x16xf32>
    %148 = arith.addf %146, %147 : vector<16x16xf32>
    %149 = arith.maximumf %50, %99 : vector<16x16xf32>
    %150 = arith.subf %149, %148 : vector<16x16xf32>
    %151 = math.absf %150 : vector<16x16xf32>
    %c0_67 = arith.constant 0 : index
    %c0_68 = arith.constant 0 : index
    %c0_69 = arith.constant 0 : index
    %c0_70 = arith.constant 0 : index
    %152 = vector.load %arg5[%c0_67, %c0_68, %c0_69, %c0_70] : memref<1x1x16x16xf32, #tpu.memory_space<vmem>>, vector<1x1x16x16xf32>
    %153 = vector.shape_cast %152 : vector<1x1x16x16xf32> to vector<16x16xf32>
    %154 = vector.shape_cast %151 : vector<16x16xf32> to vector<1x1x16x16xf32>
    tpu.vector_store %arg5[%c0_67, %c0_68, %c0_69, %c0_70], %154 {strides = array<i32>} : memref<1x1x16x16xf32, #tpu.memory_space<vmem>>, vector<1x1x16x16xf32>,
    return
  }
  func.func @transform_0(%arg0: i32, %arg1: i32) -> (i32, i32, i32, i32) {
    %c0_i32 = arith.constant 0 : i32
    %c0_i32_0 = arith.constant 0 : i32
    %c0_i32_1 = arith.constant 0 : i32
    return %arg0, %c0_i32, %arg1, %c0_i32_0 : i32, i32, i32, i32
  }
  func.func @transform_1(%arg0: i32, %arg1: i32) -> (i32, i32, i32, i32) {
    %c0_i32 = arith.constant 0 : i32
    %c0_i32_0 = arith.constant 0 : i32
    %c0_i32_1 = arith.constant 0 : i32
    return %arg0, %c0_i32, %arg1, %c0_i32_0 : i32, i32, i32, i32
  }
  func.func @transform_2(%arg0: i32, %arg1: i32) -> (i32, i32, i32, i32) {
    %c0_i32 = arith.constant 0 : i32
    %c0_i32_0 = arith.constant 0 : i32
    %c0_i32_1 = arith.constant 0 : i32
    return %arg0, %c0_i32, %arg1, %c0_i32_0 : i32, i32, i32, i32
  }
  func.func @transform_3(%arg0: i32, %arg1: i32) -> (i32, i32, i32, i32) {
    %c0_i32 = arith.constant 0 : i32
    %c0_i32_0 = arith.constant 0 : i32
    %c0_i32_1 = arith.constant 0 : i32
    return %arg0, %c0_i32, %arg1, %c0_i32_0 : i32, i32, i32, i32
  }
}

</mosaic_0001>

<llo_original>
// kernel: tpu_custom_call.1
$region0: #{tpu_custom_call.1}
  #allocation0 [shape = 'u32[]', space=smem, size = 0x4, offset = 0x4, fixed_abs, tag = 'smem constant byte address 0x4 - core index']
  #allocation1 [shape = 'u32[144,128]{1,0:T(1,128)}', space=vmem, size = 0x12000, scoped, tag = 'internal scratch']
  %s0 = inlined_call_operand.hbm [shape: f32[2,4,16,16], index: 0, kind: input, shape index: {}]
  %s1 = inlined_call_operand.hbm [shape: f32[2,1,16,16], index: 1, kind: input, shape index: {}]
  %s2 = inlined_call_operand.hbm [shape: f32[2,1,16,16], index: 2, kind: input, shape index: {}]
  %s3 = inlined_call_operand.hbm [shape: f32[2,1,16,16], index: 3, kind: output, shape index: {}]
  %s4 = sld [smem:[#allocation0]]
  $region57: #{tpu_custom_call.1} parent=0
    _
  %s6 = ssub.s32 1, %s4
  %s7 = scalar_select 0, %s6, %s4
  $region1: #{tpu_custom_call.1} parent=0
    #allocation2 [shape = 'u8[16384]{0}', space=vmem, size = 0x4000, scoped, tag = 'input window, operand 0']
    #allocation3 [shape = 's32[2]{0}', space=sflag, size = 0x8, scoped, tag = 'scoped memory for tpu_custom_call.1']
    #allocation4 [shape = 's32[2]{0}', space=sflag, size = 0x8, scoped, tag = 'scoped memory for tpu_custom_call.1']
    #allocation5 [shape = 'u8[16384]{0}', space=vmem, size = 0x4000, scoped, tag = 'input window, operand 1']
    #allocation6 [shape = 's32[2]{0}', space=sflag, size = 0x8, scoped, tag = 'scoped memory for tpu_custom_call.1']
    #allocation7 [shape = 'u8[16384]{0}', space=vmem, size = 0x4000, scoped, tag = 'input window, operand 2']
    #allocation8 [shape = 'u8[16384]{0}', space=vmem, size = 0x4000, scoped, tag = 'output window, operand 0']
    %8 = vsyncpa [#allocation3], 0
    %s9 = scalar_lea.sflag [#allocation3], 1
    %10 = vsyncpa %s9, 0
    %11 = vsyncpa [#allocation6], 0
    %s12 = scalar_lea.sflag [#allocation6], 1
    %13 = vsyncpa %s12, 0
    %14 = vsyncpa [#allocation4], 0
    %s15 = scalar_lea.sflag [#allocation4], 1
    %16 = vsyncpa %s15, 0
    loop: start=0, step=1, limit=4
    $region2: #{tpu_custom_call.1} parent=1 // loop_pre_header
      _
    $region3: #{tpu_custom_call.1} parent=1 // loop_header
      %s18 = sphi 0, %s22
      %p19 = scmp.ge.s32.totalorder %s18, 4
      %s25 = sphi 0, %s37
      %s26 = sphi 0, %s33
      %s27 = sphi 0, %s25
      %s28 = sphi 0, %s26
      %s29 = sphi 0, %s27
      %s30 = sphi 0, %s28
      %s42 = sphi 0, %s44
      %s45 = sphi 0, %s42
      %s46 = sphi 0, %s45
      %s62 = sphi 0, %s46
      %s70 = sphi 0, %s72
      %s73 = sphi 0, %s70
      %s74 = sphi 0, %s73
      %s90 = sphi 0, %s74
      %s98 = sphi 0, %s100
      %s101 = sphi 0, %s98
      %s102 = sphi 0, %s101
      %s118 = sphi 0, %s102
      %s126 = sphi 0, %s128
      %s129 = sphi 0, %s126
      %s130 = sphi 0, %s129
      %s146 = sphi 0, %s130
    $region4: #{tpu_custom_call.1} parent=1 // loop_header_branch
      %21 = sbr.rel (%p19) target = $region8
    $region5: #{tpu_custom_call.1} parent=1 // loop_body
      %s23 = ssub.s32 %s18, 1
      %s24 = ssub.s32 %s18, 2
      %s31 = sadd.s32 1, %s26
      %p32 = scmp.ge.s32.totalorder %s31, 1
      %s33 = scalar_select %p32, 0, %s31
      %s34 = sadd.s32 1, %s25
      %s35 = scalar_select %p32, %s34, %s25
      %p36 = scmp.ge.s32.totalorder %s35, 2
      %s37 = scalar_select %p36, 0, %s35
      %s38 = ssub.s32 %s25, %s37
      %s39 = ssub.s32 %s26, %s33
      %s40 = sor.u32 %s38, %s39
      %p41 = scmp.eq.s32.totalorder %s40, 0
      %s43 = sadd.s32 %s42, 1
      %s44 = scalar_select %p41, %s42, %s43
      %p47 = pneg %p41
      %p48 = scmp.eq.s32.totalorder %s18, 1
      %p49 = por %p47, %p48
      %p50 = scmp.ne.s32.totalorder %s42, %s45
      %p51 = scmp.eq.s32.totalorder %s18, 0
      %p52 = por %p50, %p51
      %p53 = scmp.ne.s32.totalorder %s42, %s45
      %p54 = scmp.eq.s32.totalorder %s23, 1
      %p55 = por %p53, %p54
      %p56 = scmp.ne.s32.totalorder %s45, %s46
      %p57 = scmp.eq.s32.totalorder %s23, 0
      %p58 = por %p56, %p57
      %p59 = scmp.ne.s32.totalorder %s45, %s46
      %p60 = scmp.eq.s32.totalorder %s24, 1
      %p61 = por %p59, %p60
      %p63 = scmp.ne.s32.totalorder %s46, %s62
      %p64 = scmp.eq.s32.totalorder %s24, 0
      %p65 = por %p63, %p64
      %s66 = ssub.s32 %s25, %s37
      %s67 = ssub.s32 %s26, %s33
      %s68 = sor.u32 %s66, %s67
      %p69 = scmp.eq.s32.totalorder %s68, 0
      %s71 = sadd.s32 %s70, 1
      %s72 = scalar_select %p69, %s70, %s71
      %p75 = pneg %p69
      %p76 = scmp.eq.s32.totalorder %s18, 1
      %p77 = por %p75, %p76
      %p78 = scmp.ne.s32.totalorder %s70, %s73
      %p79 = scmp.eq.s32.totalorder %s18, 0
      %p80 = por %p78, %p79
      %p81 = scmp.ne.s32.totalorder %s70, %s73
      %p82 = scmp.eq.s32.totalorder %s23, 1
      %p83 = por %p81, %p82
      %p84 = scmp.ne.s32.totalorder %s73, %s74
      %p85 = scmp.eq.s32.totalorder %s23, 0
      %p86 = por %p84, %p85
      %p87 = scmp.ne.s32.totalorder %s73, %s74
      %p88 = scmp.eq.s32.totalorder %s24, 1
      %p89 = por %p87, %p88
      %p91 = scmp.ne.s32.totalorder %s74, %s90
      %p92 = scmp.eq.s32.totalorder %s24, 0
      %p93 = por %p91, %p92
      %s94 = ssub.s32 %s25, %s37
      %s95 = ssub.s32 %s26, %s33
      %s96 = sor.u32 %s94, %s95
      %p97 = scmp.eq.s32.totalorder %s96, 0
      %s99 = sadd.s32 %s98, 1
      %s100 = scalar_select %p97, %s98, %s99
      %p103 = pneg %p97
      %p104 = scmp.eq.s32.totalorder %s18, 1
      %p105 = por %p103, %p104
      %p106 = scmp.ne.s32.totalorder %s98, %s101
      %p107 = scmp.eq.s32.totalorder %s18, 0
      %p108 = por %p106, %p107
      %p109 = scmp.ne.s32.totalorder %s98, %s101
      %p110 = scmp.eq.s32.totalorder %s23, 1
      %p111 = por %p109, %p110
      %p112 = scmp.ne.s32.totalorder %s101, %s102
      %p113 = scmp.eq.s32.totalorder %s23, 0
      %p114 = por %p112, %p113
      %p115 = scmp.ne.s32.totalorder %s101, %s102
      %p116 = scmp.eq.s32.totalorder %s24, 1
      %p117 = por %p115, %p116
      %p119 = scmp.ne.s32.totalorder %s102, %s118
      %p120 = scmp.eq.s32.totalorder %s24, 0
      %p121 = por %p119, %p120
      %s122 = ssub.s32 %s25, %s37
      %s123 = ssub.s32 %s26, %s33
      %s124 = sor.u32 %s122, %s123
      %p125 = scmp.eq.s32.totalorder %s124, 0
      %s127 = sadd.s32 %s126, 1
      %s128 = scalar_select %p125, %s126, %s127
      %p131 = pneg %p125
      %p132 = scmp.eq.s32.totalorder %s18, 1
      %p133 = por %p131, %p132
      %p134 = scmp.ne.s32.totalorder %s126, %s129
      %p135 = scmp.eq.s32.totalorder %s18, 0
      %p136 = por %p134, %p135
      %p137 = scmp.ne.s32.totalorder %s126, %s129
      %p138 = scmp.eq.s32.totalorder %s23, 1
      %p139 = por %p137, %p138
      %p140 = scmp.ne.s32.totalorder %s129, %s130
      %p141 = scmp.eq.s32.totalorder %s23, 0
      %p142 = por %p140, %p141
      %p143 = scmp.ne.s32.totalorder %s129, %s130
      %p144 = scmp.eq.s32.totalorder %s24, 1
      %p145 = por %p143, %p144
      %p147 = scmp.ne.s32.totalorder %s130, %s146
      %p148 = scmp.eq.s32.totalorder %s24, 0
      %p149 = por %p147, %p148
      %p150 = scmp.le.s32.totalorder 1, %s18
      %p151 = scmp.lt.s32.totalorder %s18, 3
      %p152 = pnand %p150, %p151
      %p153 = pneg %p152
      // Predicated region
      $region9: #{tpu_custom_call.1} parent=5 // pred_check
        _
      $region10: #{tpu_custom_call.1} parent=5 // pred_check_branch
        %155 = sbr.rel (%p152) target = $region12
      $region11: #{tpu_custom_call.1} parent=5 // pred_region
        %s156 = ssub.s32 %s18, 1
      $region12: #{tpu_custom_call.1} parent=5 // pred_fallthru
        _
      %p157 = scmp.lt.s32.totalorder %s18, 2
      // Predicated region
      $region13: #{tpu_custom_call.1} parent=5 // pred_check
        %p158 = pneg %p157
      $region14: #{tpu_custom_call.1} parent=5 // pred_check_branch
        %160 = sbr.rel (%p158) target = $region16
      $region15: #{tpu_custom_call.1} parent=5 // pred_region
        // Predicated region
        $region17: #{tpu_custom_call.1} parent=15 // pred_check
          %p161 = pneg %p52
        $region18: #{tpu_custom_call.1} parent=15 // pred_check_branch
          %163 = sbr.rel (%p161) target = $region20
        $region19: #{tpu_custom_call.1} parent=15 // pred_region
          %s164 = sand.u32 %s42, 1
          %s165 = scalar_lea.sflag [#allocation3], %s164
          %s166 = sand.u32 %s42, 1
          %s167 = smul.addr %s166, 16
          %s168 = scalar_lea.vmem [#allocation2], %s167
          %s169 = smul.u32 2, %s26
          %s171 = ssub.s32 256, 256
          %172 = vsyncadd %s165, %s171
          %s173 = smul.addr %s25, 8
          %s174 = sadd.s32 %s169, %s173
          %s175 = smul.addr %s174, 128
          %s176 = scalar_lea.hbm %s0, %s175
          %s177 = sshll.u32 %s168, 4
          %s178 = int_to_ptr.vmem [resolvable:$true] %s177
          %183 = dma.hbm_to_vmem [thread:$0]  %s176, 256, %s178, %s165, 128, 128, 8
        $region20: #{tpu_custom_call.1} parent=15 // pred_fallthru
          _
        // Predicated region
        $region21: #{tpu_custom_call.1} parent=15 // pred_check
          %p184 = pneg %p80
        $region22: #{tpu_custom_call.1} parent=15 // pred_check_branch
          %186 = sbr.rel (%p184) target = $region24
        $region23: #{tpu_custom_call.1} parent=15 // pred_region
          %s187 = sand.u32 %s18, 1
          %s188 = scalar_lea.sflag [#allocation6], %s187
          %s189 = sand.u32 %s70, 1
          %s190 = smul.addr %s189, 16
          %s191 = scalar_lea.vmem [#allocation5], %s190
          %s192 = smul.u32 2, %s26
          %s194 = ssub.s32 256, 256
          %195 = vsyncadd %s188, %s194
          %s196 = smul.addr %s25, 2
          %s197 = sadd.s32 %s192, %s196
          %s198 = smul.addr %s197, 128
          %s199 = scalar_lea.hbm %s1, %s198
          %s200 = sshll.u32 %s191, 4
          %s201 = int_to_ptr.vmem [resolvable:$true] %s200
          %206 = dma.hbm_to_vmem [thread:$0]  %s199, 256, %s201, %s188, 128, 128, 8
        $region24: #{tpu_custom_call.1} parent=15 // pred_fallthru
          _
        // Predicated region
        $region25: #{tpu_custom_call.1} parent=15 // pred_check
          %p207 = pneg %p108
        $region26: #{tpu_custom_call.1} parent=15 // pred_check_branch
          %209 = sbr.rel (%p207) target = $region28
        $region27: #{tpu_custom_call.1} parent=15 // pred_region
          %s210 = sand.u32 %s18, 1
          %s211 = scalar_lea.sflag [#allocation6], %s210
          %s212 = sand.u32 %s98, 1
          %s213 = smul.addr %s212, 16
          %s214 = scalar_lea.vmem [#allocation7], %s213
          %s215 = smul.u32 2, %s26
          %s217 = ssub.s32 256, 256
          %218 = vsyncadd %s211, %s217
          %s219 = smul.addr %s25, 2
          %s220 = sadd.s32 %s215, %s219
          %s221 = smul.addr %s220, 128
          %s222 = scalar_lea.hbm %s2, %s221
          %s223 = sshll.u32 %s214, 4
          %s224 = int_to_ptr.vmem [resolvable:$true] %s223
          %229 = dma.hbm_to_vmem [thread:$0]  %s222, 256, %s224, %s211, 128, 128, 8
        $region28: #{tpu_custom_call.1} parent=15 // pred_fallthru
          _
      $region16: #{tpu_custom_call.1} parent=5 // pred_fallthru
        _
      %p230 = scmp.le.s32.totalorder 1, %s18
      %p231 = scmp.lt.s32.totalorder %s18, 3
      %p232 = pnand %p230, %p231
      %p233 = pneg %p232
      // Predicated region
      $region29: #{tpu_custom_call.1} parent=5 // pred_check
        _
      $region30: #{tpu_custom_call.1} parent=5 // pred_check_branch
        %235 = sbr.rel (%p232) target = $region32
      $region31: #{tpu_custom_call.1} parent=5 // pred_region
        %s236 = ssub.s32 %s18, 1
        %s237 = sand.u32 %s45, 1
        %s238 = scalar_lea.sflag [#allocation3], %s237
        %s239 = sand.u32 %s45, 1
        %s240 = smul.addr %s239, 16
        %s241 = scalar_lea.vmem [#allocation2], %s240
        // Predicated region
        $region33: #{tpu_custom_call.1} parent=31 // pred_check
          %p242 = pneg %p58
        $region34: #{tpu_custom_call.1} parent=31 // pred_check_branch
          %244 = sbr.rel (%p242) target = $region36
        $region35: #{tpu_custom_call.1} parent=31 // pred_region
          %245 = dma.done %s238, 256
        $region36: #{tpu_custom_call.1} parent=31 // pred_fallthru
          _
        %s246 = sand.u32 %s23, 1
        %s247 = scalar_lea.sflag [#allocation6], %s246
        %s248 = sand.u32 %s73, 1
        %s249 = smul.addr %s248, 16
        %s250 = scalar_lea.vmem [#allocation5], %s249
        // Predicated region
        $region37: #{tpu_custom_call.1} parent=31 // pred_check
          %p251 = pneg %p86
        $region38: #{tpu_custom_call.1} parent=31 // pred_check_branch
          %253 = sbr.rel (%p251) target = $region40
        $region39: #{tpu_custom_call.1} parent=31 // pred_region
          %254 = dma.done %s247, 256
        $region40: #{tpu_custom_call.1} parent=31 // pred_fallthru
          _
        %s255 = sand.u32 %s23, 1
        %s256 = scalar_lea.sflag [#allocation6], %s255
        %s257 = sand.u32 %s101, 1
        %s258 = smul.addr %s257, 16
        %s259 = scalar_lea.vmem [#allocation7], %s258
        // Predicated region
        $region41: #{tpu_custom_call.1} parent=31 // pred_check
          %p260 = pneg %p114
        $region42: #{tpu_custom_call.1} parent=31 // pred_check_branch
          %262 = sbr.rel (%p260) target = $region44
        $region43: #{tpu_custom_call.1} parent=31 // pred_region
          %263 = dma.done %s256, 256
        $region44: #{tpu_custom_call.1} parent=31 // pred_fallthru
          _
        %s264 = sand.u32 %s45, 1
        %s265 = scalar_lea.sflag [#allocation3], %s264
        %s266 = sand.u32 %s45, 1
        %s267 = smul.addr %s266, 16
        %s268 = scalar_lea.vmem [#allocation2], %s267
        %p269 = pneg %p58
        %p270 = pneg %p55
        %s271 = sand.u32 %s23, 1
        %s272 = scalar_lea.sflag [#allocation6], %s271
        %s273 = sand.u32 %s73, 1
        %s274 = smul.addr %s273, 16
        %s275 = scalar_lea.vmem [#allocation5], %s274
        %p276 = pneg %p86
        %p277 = pneg %p83
        %s278 = sand.u32 %s23, 1
        %s279 = scalar_lea.sflag [#allocation6], %s278
        %s280 = sand.u32 %s101, 1
        %s281 = smul.addr %s280, 16
        %s282 = scalar_lea.vmem [#allocation7], %s281
        %p283 = pneg %p114
        %p284 = pneg %p111
        %p285 = pneg %p142
        %p286 = pneg %p139
        %s287 = sand.u32 %s129, 1
        %s288 = scalar_lea.sflag [#allocation4], %s287
        %s289 = sand.u32 %s129, 1
        %s290 = smul.addr %s289, 16
        %s291 = scalar_lea.vmem [#allocation8], %s290
        %s292 = smul.u32 2, %s28
        %s293 = smul.u32 2, %s28
        %s294 = smul.u32 2, %s28
        %s295 = smul.u32 2, %s28
        %v296 = vlaneseq
        %v297 = vshrl.u32 %v296, 7
        %v298 = vadd.s32 %v297, 8
        %v299 = vlaneseq
        %v300 = vand.u32 %v299, 127
        %v301 = vld [vmem:[%s241] sm:$0xff]
        %v302 = vld [vmem:[%s241 + $0x8] sm:$0xff]
        %vm303 = vcmp.eq.s32.totalorder %v297, 0
        %vm304 = vcmp.eq.s32.totalorder %v298, 0
        %v305 = vrot.slane %v301, 7
        %v306 = vrot.slane %v302, 7
        %vm307 = vcmp.lt.s32.totalorder %v297, 1
        %v308 = vsel %vm307, %v305, %v306
        %v309 = vsel %vm307, %v306, %v305
        %v310 = vsel %vm303, 0.0, %v309
        %v311 = vsel %vm304, 0.0, %v308
        %vm312 = vcmp.eq.s32.totalorder %v297, 15
        %vm313 = vcmp.eq.s32.totalorder %v298, 15
        %v314 = vrot.slane %v301, 1
        %v315 = vrot.slane %v302, 1
        %vm316 = vcmp.lt.s32.totalorder %v297, 7
        %v317 = vsel %vm316, %v314, %v315
        %v318 = vsel %vm316, %v315, %v314
        %v319 = vsel %vm312, 0.0, %v317
        %v320 = vsel %vm313, 0.0, %v318
        %v321 = vmul.f32 %v301, 2.0
        %v322 = vmul.f32 %v302, 2.0
        %v323 = vadd.f32 %v310, %v321
        %v324 = vadd.f32 %v311, %v322
        %v325 = vadd.f32 %v323, %v319
        %v326 = vadd.f32 %v324, %v320
        %v327 = vsub.f32 %v310, %v319
        %v328 = vsub.f32 %v311, %v320
        %vm329 = vcmp.eq.s32.totalorder %v300, 15
        %vm330 = vcmask 1047680
        %331 = vrot.lane.b32.xlu0 %v325, 16
        %v332 = vpop.permute.xlu0 %331
        %v333 = vsel %vm330, %v332, %v325
        %334 = vrot.lane.b32.xlu0 %v326, 16
        %v335 = vpop.permute.xlu0 %334
        %v336 = vsel %vm330, %v335, %v326
        %337 = vrot.lane.b32.xlu0 %v333, 16
        %v338 = vpop.permute.xlu0 %337
        %339 = vrot.lane.b32.xlu0 %v336, 16
        %v340 = vpop.permute.xlu0 %339
        %v341 = vsel %vm330, %v338, %v325
        %v342 = vsel %vm330, %v340, %v326
        %345 = vrot.lane.b32.xlu0 %v341, 127
        %v346 = vpop.permute.xlu0 %345
        %347 = vrot.lane.b32.xlu0 %v342, 127
        %v348 = vpop.permute.xlu0 %347
        %v351 = vsel %vm329, 0.0, %v346
        %v352 = vsel %vm329, 0.0, %v348
        %vm353 = vcmp.eq.s32.totalorder %v300, 0
        %354 = vrot.lane.b32.xlu0 %v341, 113
        %v355 = vpop.permute.xlu0 %354
        %356 = vrot.lane.b32.xlu0 %v342, 113
        %v357 = vpop.permute.xlu0 %356
        %v360 = vsel %vm353, 0.0, %v355
        %v361 = vsel %vm353, 0.0, %v357
        %v362 = vsub.f32 %v351, %v360
        %v363 = vsub.f32 %v352, %v361
        %364 = vrot.lane.b32.xlu0 %v327, 16
        %v365 = vpop.permute.xlu0 %364
        %v366 = vsel %vm330, %v365, %v327
        %367 = vrot.lane.b32.xlu0 %v328, 16
        %v368 = vpop.permute.xlu0 %367
        %v369 = vsel %vm330, %v368, %v328
        %370 = vrot.lane.b32.xlu0 %v366, 16
        %v371 = vpop.permute.xlu0 %370
        %372 = vrot.lane.b32.xlu0 %v369, 16
        %v373 = vpop.permute.xlu0 %372
        %v374 = vsel %vm330, %v371, %v327
        %v375 = vsel %vm330, %v373, %v328
        %378 = vrot.lane.b32.xlu0 %v374, 113
        %v379 = vpop.permute.xlu0 %378
        %380 = vrot.lane.b32.xlu0 %v375, 113
        %v381 = vpop.permute.xlu0 %380
        %v384 = vsel %vm353, 0.0, %v379
        %v385 = vsel %vm353, 0.0, %v381
        %v386 = vmul.f32 %v327, 2.0
        %v387 = vmul.f32 %v328, 2.0
        %v388 = vadd.f32 %v384, %v386
        %v389 = vadd.f32 %v385, %v387
        %390 = vrot.lane.b32.xlu0 %v374, 127
        %v391 = vpop.permute.xlu0 %390
        %392 = vrot.lane.b32.xlu0 %v375, 127
        %v393 = vpop.permute.xlu0 %392
        %v396 = vsel %vm329, 0.0, %v391
        %v397 = vsel %vm329, 0.0, %v393
        %v398 = vadd.f32 %v388, %v396
        %v399 = vadd.f32 %v389, %v397
        %v400 = vand.u32 2147483647, %v362
        %v401 = vand.u32 2147483647, %v363
        %v402 = vand.u32 2147483647, %v398
        %v403 = vand.u32 2147483647, %v399
        %v404 = vadd.f32 %v400, %v402
        %v405 = vadd.f32 %v401, %v403
        %v406 = vld [vmem:[%s250] sm:$0xff]
        %v407 = vld [vmem:[%s250 + $0x8] sm:$0xff]
        %v408 = vrot.slane %v406, 7
        %v409 = vrot.slane %v407, 7
        %v410 = vsel %vm307, %v408, %v409
        %v411 = vsel %vm307, %v409, %v408
        %v412 = vsel %vm303, 0.0, %v411
        %v413 = vsel %vm304, 0.0, %v410
        %v414 = vrot.slane %v406, 1
        %v415 = vrot.slane %v407, 1
        %v416 = vsel %vm316, %v414, %v415
        %v417 = vsel %vm316, %v415, %v414
        %v418 = vsel %vm312, 0.0, %v416
        %v419 = vsel %vm313, 0.0, %v417
        %v420 = vmul.f32 %v406, 2.0
        %v421 = vmul.f32 %v407, 2.0
        %v422 = vadd.f32 %v412, %v420
        %v423 = vadd.f32 %v413, %v421
        %v424 = vadd.f32 %v422, %v418
        %v425 = vadd.f32 %v423, %v419
        %v426 = vsub.f32 %v412, %v418
        %v427 = vsub.f32 %v413, %v419
        %428 = vrot.lane.b32.xlu0 %v424, 16
        %v429 = vpop.permute.xlu0 %428
        %v430 = vsel %vm330, %v429, %v424
        %431 = vrot.lane.b32.xlu0 %v425, 16
        %v432 = vpop.permute.xlu0 %431
        %v433 = vsel %vm330, %v432, %v425
        %434 = vrot.lane.b32.xlu0 %v430, 16
        %v435 = vpop.permute.xlu0 %434
        %436 = vrot.lane.b32.xlu0 %v433, 16
        %v437 = vpop.permute.xlu0 %436
        %v438 = vsel %vm330, %v435, %v424
        %v439 = vsel %vm330, %v437, %v425
        %442 = vrot.lane.b32.xlu0 %v438, 127
        %v443 = vpop.permute.xlu0 %442
        %444 = vrot.lane.b32.xlu0 %v439, 127
        %v445 = vpop.permute.xlu0 %444
        %v448 = vsel %vm329, 0.0, %v443
        %v449 = vsel %vm329, 0.0, %v445
        %450 = vrot.lane.b32.xlu0 %v438, 113
        %v451 = vpop.permute.xlu0 %450
        %452 = vrot.lane.b32.xlu0 %v439, 113
        %v453 = vpop.permute.xlu0 %452
        %v456 = vsel %vm353, 0.0, %v451
        %v457 = vsel %vm353, 0.0, %v453
        %v458 = vsub.f32 %v448, %v456
        %v459 = vsub.f32 %v449, %v457
        %460 = vrot.lane.b32.xlu0 %v426, 16
        %v461 = vpop.permute.xlu0 %460
        %v462 = vsel %vm330, %v461, %v426
        %463 = vrot.lane.b32.xlu0 %v427, 16
        %v464 = vpop.permute.xlu0 %463
        %v465 = vsel %vm330, %v464, %v427
        %466 = vrot.lane.b32.xlu0 %v462, 16
        %v467 = vpop.permute.xlu0 %466
        %468 = vrot.lane.b32.xlu0 %v465, 16
        %v469 = vpop.permute.xlu0 %468
        %v470 = vsel %vm330, %v467, %v426
        %v471 = vsel %vm330, %v469, %v427
        %474 = vrot.lane.b32.xlu0 %v470, 113
        %v475 = vpop.permute.xlu0 %474
        %476 = vrot.lane.b32.xlu0 %v471, 113
        %v477 = vpop.permute.xlu0 %476
        %v480 = vsel %vm353, 0.0, %v475
        %v481 = vsel %vm353, 0.0, %v477
        %v482 = vmul.f32 %v426, 2.0
        %v483 = vmul.f32 %v427, 2.0
        %v484 = vadd.f32 %v480, %v482
        %v485 = vadd.f32 %v481, %v483
        %486 = vrot.lane.b32.xlu0 %v470, 127
        %v487 = vpop.permute.xlu0 %486
        %488 = vrot.lane.b32.xlu0 %v471, 127
        %v489 = vpop.permute.xlu0 %488
        %v492 = vsel %vm329, 0.0, %v487
        %v493 = vsel %vm329, 0.0, %v489
        %v494 = vadd.f32 %v484, %v492
        %v495 = vadd.f32 %v485, %v493
        %v496 = vand.u32 2147483647, %v458
        %v497 = vand.u32 2147483647, %v459
        %v498 = vand.u32 2147483647, %v494
        %v499 = vand.u32 2147483647, %v495
        %v500 = vadd.f32 %v496, %v498
        %v501 = vadd.f32 %v497, %v499
        %v502 = vld [vmem:[%s259] sm:$0xff]
        %v503 = vld [vmem:[%s259 + $0x8] sm:$0xff]
        %v504 = vrot.slane %v502, 7
        %v505 = vrot.slane %v503, 7
        %v506 = vsel %vm307, %v504, %v505
        %v507 = vsel %vm307, %v505, %v504
        %v508 = vsel %vm303, 0.0, %v507
        %v509 = vsel %vm304, 0.0, %v506
        %v510 = vrot.slane %v502, 1
        %v511 = vrot.slane %v503, 1
        %v512 = vsel %vm316, %v510, %v511
        %v513 = vsel %vm316, %v511, %v510
        %v514 = vsel %vm312, 0.0, %v512
        %v515 = vsel %vm313, 0.0, %v513
        %v516 = vmul.f32 %v502, 2.0
        %v517 = vmul.f32 %v503, 2.0
        %v518 = vadd.f32 %v508, %v516
        %v519 = vadd.f32 %v509, %v517
        %v520 = vadd.f32 %v518, %v514
        %v521 = vadd.f32 %v519, %v515
        %v522 = vsub.f32 %v508, %v514
        %v523 = vsub.f32 %v509, %v515
        %524 = vrot.lane.b32.xlu0 %v520, 16
        %v525 = vpop.permute.xlu0 %524
        %v526 = vsel %vm330, %v525, %v520
        %527 = vrot.lane.b32.xlu0 %v521, 16
        %v528 = vpop.permute.xlu0 %527
        %v529 = vsel %vm330, %v528, %v521
        %530 = vrot.lane.b32.xlu0 %v526, 16
        %v531 = vpop.permute.xlu0 %530
        %532 = vrot.lane.b32.xlu0 %v529, 16
        %v533 = vpop.permute.xlu0 %532
        %v534 = vsel %vm330, %v531, %v520
        %v535 = vsel %vm330, %v533, %v521
        %538 = vrot.lane.b32.xlu0 %v534, 127
        %v539 = vpop.permute.xlu0 %538
        %540 = vrot.lane.b32.xlu0 %v535, 127
        %v541 = vpop.permute.xlu0 %540
        %v544 = vsel %vm329, 0.0, %v539
        %v545 = vsel %vm329, 0.0, %v541
        %546 = vrot.lane.b32.xlu0 %v534, 113
        %v547 = vpop.permute.xlu0 %546
        %548 = vrot.lane.b32.xlu0 %v535, 113
        %v549 = vpop.permute.xlu0 %548
        %v552 = vsel %vm353, 0.0, %v547
        %v553 = vsel %vm353, 0.0, %v549
        %v554 = vsub.f32 %v544, %v552
        %v555 = vsub.f32 %v545, %v553
        %556 = vrot.lane.b32.xlu0 %v522, 16
        %v557 = vpop.permute.xlu0 %556
        %v558 = vsel %vm330, %v557, %v522
        %559 = vrot.lane.b32.xlu0 %v523, 16
        %v560 = vpop.permute.xlu0 %559
        %v561 = vsel %vm330, %v560, %v523
        %562 = vrot.lane.b32.xlu0 %v558, 16
        %v563 = vpop.permute.xlu0 %562
        %564 = vrot.lane.b32.xlu0 %v561, 16
        %v565 = vpop.permute.xlu0 %564
        %v566 = vsel %vm330, %v563, %v522
        %v567 = vsel %vm330, %v565, %v523
        %570 = vrot.lane.b32.xlu0 %v566, 113
        %v571 = vpop.permute.xlu0 %570
        %572 = vrot.lane.b32.xlu0 %v567, 113
        %v573 = vpop.permute.xlu0 %572
        %v576 = vsel %vm353, 0.0, %v571
        %v577 = vsel %vm353, 0.0, %v573
        %v578 = vmul.f32 %v522, 2.0
        %v579 = vmul.f32 %v523, 2.0
        %v580 = vadd.f32 %v576, %v578
        %v581 = vadd.f32 %v577, %v579
        %582 = vrot.lane.b32.xlu0 %v566, 127
        %v583 = vpop.permute.xlu0 %582
        %584 = vrot.lane.b32.xlu0 %v567, 127
        %v585 = vpop.permute.xlu0 %584
        %v588 = vsel %vm329, 0.0, %v583
        %v589 = vsel %vm329, 0.0, %v585
        %v590 = vadd.f32 %v580, %v588
        %v591 = vadd.f32 %v581, %v589
        %v592 = vand.u32 2147483647, %v554
        %v593 = vand.u32 2147483647, %v555
        %v594 = vand.u32 2147483647, %v590
        %v595 = vand.u32 2147483647, %v591
        %v596 = vadd.f32 %v592, %v594
        %v597 = vadd.f32 %v593, %v595
        %v598 = vmax.f32 %v404, %v500
        %v599 = vmax.f32 %v405, %v501
        %v600 = vsub.f32 %v598, %v596
        %v601 = vsub.f32 %v599, %v597
        %v602 = vand.u32 2147483647, %v600
        %v603 = vand.u32 2147483647, %v601
        %vm604 = vcmask 130048
        %605 = vst.msk [vmem:[%s291] sm:$0xff] %vm604, %v602
        %606 = vst.msk [vmem:[%s291 + $0x8] sm:$0xff] %vm604, %v603
        %s607 = sand.u32 %s129, 1
        %s608 = scalar_lea.sflag [#allocation4], %s607
        %s609 = sand.u32 %s129, 1
        %s610 = smul.addr %s609, 16
        %s611 = scalar_lea.vmem [#allocation8], %s610
        // Predicated region
        $region45: #{tpu_custom_call.1} parent=31 // pred_check
          %p612 = pneg %p139
        $region46: #{tpu_custom_call.1} parent=31 // pred_check_branch
          %614 = sbr.rel (%p612) target = $region48
        $region47: #{tpu_custom_call.1} parent=31 // pred_region
          %s615 = smul.u32 2, %s28
          %s617 = ssub.s32 256, 256
          %618 = vsyncadd %s608, %s617
          %s619 = smul.addr %s27, 2
          %s620 = sadd.s32 %s615, %s619
          %s621 = smul.addr %s620, 128
          %s622 = scalar_lea.hbm %s3, %s621
          %s623 = sshll.u32 %s611, 4
          %s624 = int_to_ptr.vmem [resolvable:$true] %s623
          %629 = dma.vmem_to_hbm [thread:$0]  %s624, 256, %s622, %s608, 128, 128, 8
        $region48: #{tpu_custom_call.1} parent=31 // pred_fallthru
          _
      $region32: #{tpu_custom_call.1} parent=5 // pred_fallthru
        _
      %p630 = scmp.le.s32.totalorder 2, %s18
      // Predicated region
      $region49: #{tpu_custom_call.1} parent=5 // pred_check
        %p631 = pneg %p630
      $region50: #{tpu_custom_call.1} parent=5 // pred_check_branch
        %633 = sbr.rel (%p631) target = $region52
      $region51: #{tpu_custom_call.1} parent=5 // pred_region
        %s634 = ssub.s32 %s18, 2
        // Predicated region
        $region53: #{tpu_custom_call.1} parent=51 // pred_check
          %p635 = pneg %p145
        $region54: #{tpu_custom_call.1} parent=51 // pred_check_branch
          %637 = sbr.rel (%p635) target = $region56
        $region55: #{tpu_custom_call.1} parent=51 // pred_region
          %s638 = sand.u32 %s130, 1
          %s639 = scalar_lea.sflag [#allocation4], %s638
          %s640 = sand.u32 %s130, 1
          %s641 = smul.addr %s640, 16
          %s642 = scalar_lea.vmem [#allocation8], %s641
          %643 = dma.done %s639, 256
        $region56: #{tpu_custom_call.1} parent=51 // pred_fallthru
          _
      $region52: #{tpu_custom_call.1} parent=5 // pred_fallthru
        _
    $region6: #{tpu_custom_call.1} parent=1 // loop_footer
      %s22 = sadd.s32 1, %s18
    $region7: #{tpu_custom_call.1} parent=1 // loop_footer_branch
      %17 = sbr.rel target = $region3
    $region8: #{tpu_custom_call.1} parent=1 // loop_exit
      _
    %644 = vsyncpa [#allocation3], 1
    %s645 = scalar_lea.sflag [#allocation3], 1
    %646 = vsyncpa %s645, 1
    %647 = vsyncpa [#allocation6], 1
    %s648 = scalar_lea.sflag [#allocation6], 1
    %649 = vsyncpa %s648, 1
    %650 = vsyncpa [#allocation4], 1
    %s651 = scalar_lea.sflag [#allocation4], 1
    %652 = vsyncpa %s651, 1

</llo_original>
